<compile_context>
chip_gen: v5e
topology: v5e:2x2
jax: 0.10.0
libtpu: 0.0.40
codegen_flags: <defaults>
</compile_context>

<pallas_src>
import jax
import jax.numpy as jnp
from jax import lax
from jax.experimental import pallas as pl
from jax.experimental.pallas import tpu as pltpu


def _mf_kernel(uid_ref, iid_ref, pT_ref, qT_ref, out_ref):
    # uid_ref / iid_ref : (1, 1, TB) int32   ids for this batch tile (VMEM)
    # pT_ref            : (D, M) float32     VMEM-resident P^T (whole table)
    # qT_ref            : (D, N) float32     VMEM-resident Q^T (whole table)
    # out_ref           : (1, 1, TB) float32 lane-dense output tile
    uids = uid_ref[0]                      # (1, TB)
    iids = iid_ref[0]                      # (1, TB)

    M = pT_ref.shape[1]
    N = qT_ref.shape[1]
    TB = uids.shape[-1]

    # One-hot selection matrices, batch along lanes.
    rows_u = lax.broadcasted_iota(jnp.int32, (M, TB), 0)
    rows_i = lax.broadcasted_iota(jnp.int32, (N, TB), 0)
    onehot_u = (rows_u == uids).astype(pT_ref.dtype)       # (M, TB)
    onehot_i = (rows_i == iids).astype(qT_ref.dtype)       # (N, TB)

    # MXU one-hot gather: (D, M) @ (M, TB) -> (D, TB) == P[uids].T
    # HIGHEST precision keeps the selected f32 values exact (bf16 truncation
    # of the table values would show up in the output).
    p_t = jnp.dot(pT_ref[...], onehot_u,
                  precision=lax.Precision.HIGHEST,
                  preferred_element_type=jnp.float32)
    q_t = jnp.dot(qT_ref[...], onehot_i,
                  precision=lax.Precision.HIGHEST,
                  preferred_element_type=jnp.float32)

    # VPU multiply + sublane reduce -> (1, TB), stored lane-dense.
    out_ref[0] = jnp.sum(p_t * q_t, axis=0, keepdims=True)


def mf_forward(P, Q, user_ids, item_ids, *, tile_b=128):
    """Pallas MF forward.

    P: (M, D) float32, Q: (N, D) float32
    user_ids, item_ids: (B,) integer ids
    returns: (B, 1) float32
    """
    M, D = P.shape
    N, Dq = Q.shape
    assert D == Dq
    assert tile_b % 128 == 0, "tile_b must be a multiple of 128 (lane width)"
    B = user_ids.shape[0]
    assert item_ids.shape[0] == B

    num_tiles = pl.cdiv(B, tile_b)
    b_pad = num_tiles * tile_b

    # Pad ids with 0 (a valid row); padded outputs are sliced away below.
    uid = jnp.pad(user_ids.astype(jnp.int32), (0, b_pad - B))
    iid = jnp.pad(item_ids.astype(jnp.int32), (0, b_pad - B))
    uid = uid.reshape(num_tiles, 1, tile_b)
    iid = iid.reshape(num_tiles, 1, tile_b)

    # Transposed tables so gathered activations are (D, TB) (batch on lanes).
    pT = P.astype(jnp.float32).T            # (D, M)
    qT = Q.astype(jnp.float32).T            # (D, N)

    grid_spec = pltpu.PrefetchScalarGridSpec(
        num_scalar_prefetch=0,
        grid=(num_tiles,),
        in_specs=[
            pl.BlockSpec((1, 1, tile_b), lambda i: (i, 0, 0)),   # uid tile
            pl.BlockSpec((1, 1, tile_b), lambda i: (i, 0, 0)),   # iid tile
            pl.BlockSpec((D, M), lambda i: (0, 0)),              # resident P^T
            pl.BlockSpec((D, N), lambda i: (0, 0)),              # resident Q^T
        ],
        out_specs=pl.BlockSpec((1, 1, tile_b), lambda i: (i, 0, 0)),
    )

    out_tiles = pl.pallas_call(
        _mf_kernel,
        out_shape=jax.ShapeDtypeStruct((num_tiles, 1, tile_b), jnp.float32),
        grid_spec=grid_spec,
        compiler_params=pltpu.CompilerParams(
            # Independent batch tiles -> megacore-shardable on v7x.
            dimension_semantics=("parallel",),
        ),
    )(uid, iid, pT, qT)

    return out_tiles.reshape(-1)[:B].reshape(-1, 1)


if __name__ == "__main__":
    # Small, deterministic setup consistent with MF.__init__
    M, N, embedding_dim = 10, 12, 32
    B = 8

    key = jax.random.PRNGKey(0)
    kP, kQ, kU, kI = jax.random.split(key, 4)

    # nn.init.normal_(std=0.01)
    P = (0.01 * jax.random.normal(kP, (M, embedding_dim))).astype(jnp.float32)
    Q = (0.01 * jax.random.normal(kQ, (N, embedding_dim))).astype(jnp.float32)

    user_ids = jax.random.randint(kU, (B,), 0, M, dtype=jnp.int32)
    item_ids = jax.random.randint(kI, (B,), 0, N, dtype=jnp.int32)

    out = mf_forward(P, Q, user_ids, item_ids)
    out = jax.block_until_ready(out)

    # reference check (plain JAX)
    ref = jnp.sum(P[user_ids] * Q[item_ids], axis=-1).reshape(-1, 1)
    assert out.shape == (B, 1)
    assert jnp.allclose(out, ref, atol=1e-6, rtol=1e-5)

    print("KERNEL_OK")
</pallas_src>

<mosaic_0001>
module attributes {stable_mosaic.version = 11 : i64} {
  func.func @_mf_kernel(%arg0: i32, %arg1: memref<1x1x128xi32, #tpu.memory_space<vmem>>, %arg2: memref<1x1x128xi32, #tpu.memory_space<vmem>>, %arg3: memref<32x10xf32, #tpu.memory_space<vmem>>, %arg4: memref<32x12xf32, #tpu.memory_space<vmem>>, %arg5: memref<1x1x128xf32, #tpu.memory_space<vmem>>) attributes {dimension_semantics = [#tpu.dimension_semantics<parallel>], iteration_bounds = array<i64: 1>, scalar_prefetch = 0 : i64, scratch_operands = 0 : i64, tpu.core_type = #tpu.core_type<tc>, window_params = [{transform_indices = @transform_0, window_bounds = array<i64: 1, 1, 128>}, {transform_indices = @transform_1, window_bounds = array<i64: 1, 1, 128>}, {pipeline_mode = #tpu.pipeline_mode<synchronous>, transform_indices = @transform_2, window_bounds = array<i64: 32, 10>}, {pipeline_mode = #tpu.pipeline_mode<synchronous>, transform_indices = @transform_3, window_bounds = array<i64: 32, 12>}, {transform_indices = @transform_4, window_bounds = array<i64: 1, 1, 128>}]} {
    %c0 = arith.constant 0 : index
    %c0_0 = arith.constant 0 : index
    %c0_1 = arith.constant 0 : index
    %0 = vector.load %arg1[%c0, %c0_0, %c0_1] : memref<1x1x128xi32, #tpu.memory_space<vmem>>, vector<1x1x128xi32>
    %1 = vector.shape_cast %0 : vector<1x1x128xi32> to vector<1x128xi32>
    %c0_2 = arith.constant 0 : index
    %c0_3 = arith.constant 0 : index
    %c0_4 = arith.constant 0 : index
    %2 = vector.load %arg2[%c0_2, %c0_3, %c0_4] : memref<1x1x128xi32, #tpu.memory_space<vmem>>, vector<1x1x128xi32>
    %3 = vector.shape_cast %2 : vector<1x1x128xi32> to vector<1x128xi32>
    %4 = tpu.iota {dimensions = array<i32: 0>} : vector<10x128xi32>
    %5 = tpu.iota {dimensions = array<i32: 0>} : vector<12x128xi32>
    %6 = vector.broadcast %1 : vector<1x128xi32> to vector<10x128xi32>
    %7 = arith.cmpi eq, %4, %6 : vector<10x128xi32>
    %8 = arith.extui %7 : vector<10x128xi1> to vector<10x128xi32>
    %9 = arith.sitofp %8 : vector<10x128xi32> to vector<10x128xf32>
    %10 = vector.broadcast %3 : vector<1x128xi32> to vector<12x128xi32>
    %11 = arith.cmpi eq, %5, %10 : vector<12x128xi32>
    %12 = arith.extui %11 : vector<12x128xi1> to vector<12x128xi32>
    %13 = arith.sitofp %12 : vector<12x128xi32> to vector<12x128xf32>
    %c0_5 = arith.constant 0 : index
    %c0_6 = arith.constant 0 : index
    %14 = vector.load %arg3[%c0_5, %c0_6] : memref<32x10xf32, #tpu.memory_space<vmem>>, vector<32x10xf32>
    %cst = arith.constant dense<0.000000e+00> : vector<32x128xf32>
    %15 = tpu.matmul %14, %9, %cst {dimension_numbers = #tpu.dot_dimension_numbers<[1], [0], [0], [1], [0, 0, 1, 1], [], []>, precision = #tpu.contract_precision<fp32>} : vector<32x10xf32>, vector<10x128xf32>, vector<32x128xf32> -> vector<32x128xf32>
    %c0_7 = arith.constant 0 : index
    %c0_8 = arith.constant 0 : index
    %16 = vector.load %arg4[%c0_7, %c0_8] : memref<32x12xf32, #tpu.memory_space<vmem>>, vector<32x12xf32>
    %cst_9 = arith.constant dense<0.000000e+00> : vector<32x128xf32>
    %17 = tpu.matmul %16, %13, %cst_9 {dimension_numbers = #tpu.dot_dimension_numbers<[1], [0], [0], [1], [0, 0, 1, 1], [], []>, precision = #tpu.contract_precision<fp32>} : vector<32x12xf32>, vector<12x128xf32>, vector<32x128xf32> -> vector<32x128xf32>
    %18 = arith.mulf %15, %17 : vector<32x128xf32>
    %cst_10 = arith.constant dense<0.000000e+00> : vector<128xf32>
    %19 = vector.multi_reduction <add>, %18, %cst_10 [0] : vector<32x128xf32> to vector<128xf32>
    %20 = vector.shape_cast %19 : vector<128xf32> to vector<1x128xf32>
    %c0_11 = arith.constant 0 : index
    %c0_12 = arith.constant 0 : index
    %c0_13 = arith.constant 0 : index
    %21 = vector.load %arg5[%c0_11, %c0_12, %c0_13] : memref<1x1x128xf32, #tpu.memory_space<vmem>>, vector<1x1x128xf32>
    %22 = vector.shape_cast %21 : vector<1x1x128xf32> to vector<1x128xf32>
    %23 = vector.shape_cast %20 : vector<1x128xf32> to vector<1x1x128xf32>
    tpu.vector_store %arg5[%c0_11, %c0_12, %c0_13], %23 {strides = array<i32>} : memref<1x1x128xf32, #tpu.memory_space<vmem>>, vector<1x1x128xf32>,
    return
  }
  func.func @transform_0(%arg0: i32) -> (i32, i32, i32) {
    %c0_i32 = arith.constant 0 : i32
    %c0_i32_0 = arith.constant 0 : i32
    %c0_i32_1 = arith.constant 0 : i32
    return %arg0, %c0_i32, %c0_i32_0 : i32, i32, i32
  }
  func.func @transform_1(%arg0: i32) -> (i32, i32, i32) {
    %c0_i32 = arith.constant 0 : i32
    %c0_i32_0 = arith.constant 0 : i32
    %c0_i32_1 = arith.constant 0 : i32
    return %arg0, %c0_i32, %c0_i32_0 : i32, i32, i32
  }
  func.func @transform_2(%arg0: i32) -> (i32, i32) {
    %c0_i32 = arith.constant 0 : i32
    %c0_i32_0 = arith.constant 0 : i32
    %c0_i32_1 = arith.constant 0 : i32
    return %c0_i32, %c0_i32_0 : i32, i32
  }
  func.func @transform_3(%arg0: i32) -> (i32, i32) {
    %c0_i32 = arith.constant 0 : i32
    %c0_i32_0 = arith.constant 0 : i32
    %c0_i32_1 = arith.constant 0 : i32
    return %c0_i32, %c0_i32_0 : i32, i32
  }
  func.func @transform_4(%arg0: i32) -> (i32, i32, i32) {
    %c0_i32 = arith.constant 0 : i32
    %c0_i32_0 = arith.constant 0 : i32
    %c0_i32_1 = arith.constant 0 : i32
    return %arg0, %c0_i32, %c0_i32_0 : i32, i32, i32
  }
}

</mosaic_0001>

<llo_original>
// kernel: tpu_custom_call.1
$region0: #{tpu_custom_call.1}
  #allocation0 [shape = 'u32[]', space=smem, size = 0x4, offset = 0x4, fixed_abs, tag = 'smem constant byte address 0x4 - core index']
  #allocation1 [shape = 'u32[72,128]{1,0:T(1,128)}', space=vmem, size = 0x9000, scoped, tag = 'internal scratch']
  %s0 = inlined_call_operand.vmem [shape: s32[1,1,128], index: 0, kind: input, shape index: {}]
  %s1 = inlined_call_operand.vmem [shape: s32[1,1,128], index: 1, kind: input, shape index: {}]
  %s2 = inlined_call_operand.vmem [shape: f32[32,10], index: 2, kind: input, shape index: {}]
  %s3 = inlined_call_operand.vmem [shape: f32[32,12], index: 3, kind: input, shape index: {}]
  %s4 = inlined_call_operand.hbm [shape: f32[1,1,128], index: 4, kind: output, shape index: {}]
  %s5 = sld [smem:[#allocation0]]
  $region26: #{tpu_custom_call.1} parent=0
    _
  %s7 = ssub.s32 1, %s5
  %s8 = scalar_select 0, %s7, %s5
  $region1: #{tpu_custom_call.1} parent=0
    #allocation2 [shape = 'u8[512]{0}', space=vmem, size = 0x400, scoped, tag = 'output window, operand 0, single buffered']
    #allocation3 [shape = 's32[1]{0}', space=sflag, size = 0x4, scoped, tag = 'scoped memory for tpu_custom_call.1']
    %9 = vsyncpa [#allocation3], 0
    // Predicated region
    $region2: #{tpu_custom_call.1} parent=1 // pred_check
      _
    $region3: #{tpu_custom_call.1} parent=1 // pred_check_branch
      %11 = sbr.rel (0) target = $region5
    $region4: #{tpu_custom_call.1} parent=1 // pred_region
      _
    $region5: #{tpu_custom_call.1} parent=1 // pred_fallthru
      _
    // Predicated region
    $region6: #{tpu_custom_call.1} parent=1 // pred_check
      _
    $region7: #{tpu_custom_call.1} parent=1 // pred_check_branch
      %13 = sbr.rel (0) target = $region9
    $region8: #{tpu_custom_call.1} parent=1 // pred_region
      _
    $region9: #{tpu_custom_call.1} parent=1 // pred_fallthru
      _
    // Predicated region
    $region10: #{tpu_custom_call.1} parent=1 // pred_check
      _
    $region11: #{tpu_custom_call.1} parent=1 // pred_check_branch
      %15 = sbr.rel (0) target = $region13
    $region12: #{tpu_custom_call.1} parent=1 // pred_region
      _
    $region13: #{tpu_custom_call.1} parent=1 // pred_fallthru
      _
    // Predicated region
    $region14: #{tpu_custom_call.1} parent=1 // pred_check
      _
    $region15: #{tpu_custom_call.1} parent=1 // pred_check_branch
      %17 = sbr.rel (0) target = $region17
    $region16: #{tpu_custom_call.1} parent=1 // pred_region
      _
    $region17: #{tpu_custom_call.1} parent=1 // pred_fallthru
      _
    %v18 = vld [vmem:[%s0] sm:$0x1]
    %v19 = vld [vmem:[%s1] sm:$0x1]
    %v20 = vlaneseq
    %v21 = vshrl.u32 %v20, 7
    %v22 = vadd.s32 %v21, 8
    %v23 = vperm.slane %v18, 0
    %vm24 = vcmp.eq.s32.totalorder %v21, %v23
    %vm25 = vcmp.eq.s32.totalorder %v22, %v23
    %v26 = vsel %vm24, 1, 0
    %v27 = vsel %vm25, 1, 0
    %v28 = vcvt.s32.f32 %v26
    %v29 = vcvt.s32.f32 %v27
    %v30 = vperm.slane %v19, 0
    %vm31 = vcmp.eq.s32.totalorder %v21, %v30
    %vm32 = vcmp.eq.s32.totalorder %v22, %v30
    %v33 = vsel %vm31, 1, 0
    %v34 = vsel %vm32, 1, 0
    %v35 = vcvt.s32.f32 %v33
    %v36 = vcvt.s32.f32 %v34
    %v37 = vld [vmem:[%s2] sm:$0xff]
    %v38 = vld [vmem:[%s2 + $0x8] sm:$0xff]
    %v39 = vld [vmem:[%s2 + $0x10] sm:$0xff]
    %v40 = vld [vmem:[%s2 + $0x18] sm:$0xff]
    %vm41 = vcmask 80896
    %v43 = vsel %vm41, %v37, 0
    %v46 = vsel %vm41, %v38, 0
    %v49 = vsel %vm41, %v39, 0
    %v52 = vsel %vm41, %v40, 0
    %vm54 = vcmask 1041408
    %v56 = vsel %vm54, %v29, 0
    %58 = vmatpush.msra.mxu0 0.0
    %59 = vmatpush.msra.mxu0 0.0
    %60 = vmatpush.msra.mxu0 0.0
    %61 = vmatpush.msra.mxu0 0.0
    %62 = vmatpush.msra.mxu0 0.0
    %63 = vmatpush.msra.mxu0 0.0
    %64 = vmatpush.msra.mxu0 0.0
    %65 = vmatpush.msra.mxu0 0.0
    %66 = vmatpush.msra.mxu0 0.0
    %67 = vmatpush.msra.mxu0 0.0
    %68 = vmatpush.msra.mxu0 0.0
    %69 = vmatpush.msra.mxu0 0.0
    %70 = vmatpush.msra.mxu0 0.0
    %71 = vmatpush.msra.mxu0 0.0
    %v72 = vand.u32 %v56, 4294901760
    %73 = vmatpush.msra.mxu0 %v72
    %v74 = vand.u32 %v28, 4294901760
    %75 = vmatpush.msra.mxu0 %v74
    %v76 = vand.u32 %v43, 4294901760
    %v77 = vsub.f32 %v43, %v76
    %v78 = vand.u32 %v77, 4294901760
    %v79 = vsub.f32 %v77, %v78
    %v80 = vand.u32 %v79, 4294901760
    %81 = vmatmul.f32.gmra.mxu0 %v80
    %v82 = vpop.f32.mrf.mxu0
    %v83 = vadd.f32 0.0, %v82
    %v84 = vand.u32 %v46, 4294901760
    %v85 = vsub.f32 %v46, %v84
    %v86 = vand.u32 %v85, 4294901760
    %v87 = vsub.f32 %v85, %v86
    %v88 = vand.u32 %v87, 4294901760
    %89 = vmatmul.f32.gmra.mxu0 %v88
    %v90 = vpop.f32.mrf.mxu0
    %v91 = vadd.f32 0.0, %v90
    %v92 = vand.u32 %v49, 4294901760
    %v93 = vsub.f32 %v49, %v92
    %v94 = vand.u32 %v93, 4294901760
    %v95 = vsub.f32 %v93, %v94
    %v96 = vand.u32 %v95, 4294901760
    %97 = vmatmul.f32.gmra.mxu0 %v96
    %v98 = vpop.f32.mrf.mxu0
    %v99 = vadd.f32 0.0, %v98
    %v100 = vand.u32 %v52, 4294901760
    %v101 = vsub.f32 %v52, %v100
    %v102 = vand.u32 %v101, 4294901760
    %v103 = vsub.f32 %v101, %v102
    %v104 = vand.u32 %v103, 4294901760
    %105 = vmatmul.f32.gmra.mxu0 %v104
    %v106 = vpop.f32.mrf.mxu0
    %v107 = vadd.f32 0.0, %v106
    %108 = vdwg.mxu0
    %109 = vmatpush.msra.mxu0 0.0
    %110 = vmatpush.msra.mxu0 0.0
    %111 = vmatpush.msra.mxu0 0.0
    %112 = vmatpush.msra.mxu0 0.0
    %113 = vmatpush.msra.mxu0 0.0
    %114 = vmatpush.msra.mxu0 0.0
    %115 = vmatpush.msra.mxu0 0.0
    %116 = vmatpush.msra.mxu0 0.0
    %117 = vmatpush.msra.mxu0 0.0
    %118 = vmatpush.msra.mxu0 0.0
    %119 = vmatpush.msra.mxu0 0.0
    %120 = vmatpush.msra.mxu0 0.0
    %121 = vmatpush.msra.mxu0 0.0
    %122 = vmatpush.msra.mxu0 0.0
    %v123 = vand.u32 %v56, 4294901760
    %v124 = vsub.f32 %v56, %v123
    %v125 = vand.u32 %v124, 4294901760
    %v126 = vsub.f32 %v124, %v125
    %v127 = vand.u32 %v126, 4294901760
    %128 = vmatpush.msra.mxu0 %v127
    %v129 = vand.u32 %v28, 4294901760
    %v130 = vsub.f32 %v28, %v129
    %v131 = vand.u32 %v130, 4294901760
    %v132 = vsub.f32 %v130, %v131
    %v133 = vand.u32 %v132, 4294901760
    %134 = vmatpush.msra.mxu0 %v133
    %v135 = vand.u32 %v43, 4294901760
    %136 = vmatmul.f32.gmra.mxu0 %v135
    %v137 = vpop.f32.mrf.mxu0
    %v138 = vadd.f32 %v83, %v137
    %v139 = vand.u32 %v46, 4294901760
    %140 = vmatmul.f32.gmra.mxu0 %v139
    %v141 = vpop.f32.mrf.mxu0
    %v142 = vadd.f32 %v91, %v141
    %v143 = vand.u32 %v49, 4294901760
    %144 = vmatmul.f32.gmra.mxu0 %v143
    %v145 = vpop.f32.mrf.mxu0
    %v146 = vadd.f32 %v99, %v145
    %v147 = vand.u32 %v52, 4294901760
    %148 = vmatmul.f32.gmra.mxu0 %v147
    %v149 = vpop.f32.mrf.mxu0
    %v150 = vadd.f32 %v107, %v149
    %151 = vdwg.mxu0
    %152 = vmatpush.msra.mxu0 0.0
    %153 = vmatpush.msra.mxu0 0.0
    %154 = vmatpush.msra.mxu0 0.0
    %155 = vmatpush.msra.mxu0 0.0
    %156 = vmatpush.msra.mxu0 0.0
    %157 = vmatpush.msra.mxu0 0.0
    %158 = vmatpush.msra.mxu0 0.0
    %159 = vmatpush.msra.mxu0 0.0
    %160 = vmatpush.msra.mxu0 0.0
    %161 = vmatpush.msra.mxu0 0.0
    %162 = vmatpush.msra.mxu0 0.0
    %163 = vmatpush.msra.mxu0 0.0
    %164 = vmatpush.msra.mxu0 0.0
    %165 = vmatpush.msra.mxu0 0.0
    %v166 = vand.u32 %v56, 4294901760
    %v167 = vsub.f32 %v56, %v166
    %168 = vmatpush.msra.mxu0 %v167
    %v169 = vand.u32 %v28, 4294901760
    %v170 = vsub.f32 %v28, %v169
    %171 = vmatpush.msra.mxu0 %v170
    %v172 = vand.u32 %v43, 4294901760
    %v173 = vsub.f32 %v43, %v172
    %174 = vmatmul.f32.gmra.mxu0 %v173
    %v175 = vpop.f32.mrf.mxu0
    %v176 = vadd.f32 %v138, %v175
    %v177 = vand.u32 %v46, 4294901760
    %v178 = vsub.f32 %v46, %v177
    %179 = vmatmul.f32.gmra.mxu0 %v178
    %v180 = vpop.f32.mrf.mxu0
    %v181 = vadd.f32 %v142, %v180
    %v182 = vand.u32 %v49, 4294901760
    %v183 = vsub.f32 %v49, %v182
    %184 = vmatmul.f32.gmra.mxu0 %v183
    %v185 = vpop.f32.mrf.mxu0
    %v186 = vadd.f32 %v146, %v185
    %v187 = vand.u32 %v52, 4294901760
    %v188 = vsub.f32 %v52, %v187
    %189 = vmatmul.f32.gmra.mxu0 %v188
    %v190 = vpop.f32.mrf.mxu0
    %v191 = vadd.f32 %v150, %v190
    %192 = vdwg.mxu0
    %193 = vmatpush.msra.mxu0 0.0
    %194 = vmatpush.msra.mxu0 0.0
    %195 = vmatpush.msra.mxu0 0.0
    %196 = vmatpush.msra.mxu0 0.0
    %197 = vmatpush.msra.mxu0 0.0
    %198 = vmatpush.msra.mxu0 0.0
    %199 = vmatpush.msra.mxu0 0.0
    %200 = vmatpush.msra.mxu0 0.0
    %201 = vmatpush.msra.mxu0 0.0
    %202 = vmatpush.msra.mxu0 0.0
    %203 = vmatpush.msra.mxu0 0.0
    %204 = vmatpush.msra.mxu0 0.0
    %205 = vmatpush.msra.mxu0 0.0
    %206 = vmatpush.msra.mxu0 0.0
    %v207 = vand.u32 %v56, 4294901760
    %208 = vmatpush.msra.mxu0 %v207
    %v209 = vand.u32 %v28, 4294901760
    %210 = vmatpush.msra.mxu0 %v209
    %v211 = vand.u32 %v43, 4294901760
    %v212 = vsub.f32 %v43, %v211
    %v213 = vand.u32 %v212, 4294901760
    %214 = vmatmul.f32.gmra.mxu0 %v213
    %v215 = vpop.f32.mrf.mxu0
    %v216 = vadd.f32 %v176, %v215
    %v217 = vand.u32 %v46, 4294901760
    %v218 = vsub.f32 %v46, %v217
    %v219 = vand.u32 %v218, 4294901760
    %220 = vmatmul.f32.gmra.mxu0 %v219
    %v221 = vpop.f32.mrf.mxu0
    %v222 = vadd.f32 %v181, %v221
    %v223 = vand.u32 %v49, 4294901760
    %v224 = vsub.f32 %v49, %v223
    %v225 = vand.u32 %v224, 4294901760
    %226 = vmatmul.f32.gmra.mxu0 %v225
    %v227 = vpop.f32.mrf.mxu0
    %v228 = vadd.f32 %v186, %v227
    %v229 = vand.u32 %v52, 4294901760
    %v230 = vsub.f32 %v52, %v229
    %v231 = vand.u32 %v230, 4294901760
    %232 = vmatmul.f32.gmra.mxu0 %v231
    %v233 = vpop.f32.mrf.mxu0
    %v234 = vadd.f32 %v191, %v233
    %235 = vdwg.mxu0
    %236 = vmatpush.msra.mxu0 0.0
    %237 = vmatpush.msra.mxu0 0.0
    %238 = vmatpush.msra.mxu0 0.0
    %239 = vmatpush.msra.mxu0 0.0
    %240 = vmatpush.msra.mxu0 0.0
    %241 = vmatpush.msra.mxu0 0.0
    %242 = vmatpush.msra.mxu0 0.0
    %243 = vmatpush.msra.mxu0 0.0
    %244 = vmatpush.msra.mxu0 0.0
    %245 = vmatpush.msra.mxu0 0.0
    %246 = vmatpush.msra.mxu0 0.0
    %247 = vmatpush.msra.mxu0 0.0
    %248 = vmatpush.msra.mxu0 0.0
    %249 = vmatpush.msra.mxu0 0.0
    %v250 = vand.u32 %v56, 4294901760
    %v251 = vsub.f32 %v56, %v250
    %v252 = vand.u32 %v251, 4294901760
    %253 = vmatpush.msra.mxu0 %v252
    %v254 = vand.u32 %v28, 4294901760
    %v255 = vsub.f32 %v28, %v254
    %v256 = vand.u32 %v255, 4294901760
    %257 = vmatpush.msra.mxu0 %v256
    %v258 = vand.u32 %v43, 4294901760
    %259 = vmatmul.f32.gmra.mxu0 %v258
    %v260 = vpop.f32.mrf.mxu0
    %v261 = vadd.f32 %v216, %v260
    %v262 = vand.u32 %v46, 4294901760
    %263 = vmatmul.f32.gmra.mxu0 %v262
    %v264 = vpop.f32.mrf.mxu0
    %v265 = vadd.f32 %v222, %v264
    %v266 = vand.u32 %v49, 4294901760
    %267 = vmatmul.f32.gmra.mxu0 %v266
    %v268 = vpop.f32.mrf.mxu0
    %v269 = vadd.f32 %v228, %v268
    %v270 = vand.u32 %v52, 4294901760
    %271 = vmatmul.f32.gmra.mxu0 %v270
    %v272 = vpop.f32.mrf.mxu0
    %v273 = vadd.f32 %v234, %v272
    %274 = vdwg.mxu0
    %275 = vmatpush.msra.mxu0 0.0
    %276 = vmatpush.msra.mxu0 0.0
    %277 = vmatpush.msra.mxu0 0.0
    %278 = vmatpush.msra.mxu0 0.0
    %279 = vmatpush.msra.mxu0 0.0
    %280 = vmatpush.msra.mxu0 0.0
    %281 = vmatpush.msra.mxu0 0.0
    %282 = vmatpush.msra.mxu0 0.0
    %283 = vmatpush.msra.mxu0 0.0
    %284 = vmatpush.msra.mxu0 0.0
    %285 = vmatpush.msra.mxu0 0.0
    %286 = vmatpush.msra.mxu0 0.0
    %287 = vmatpush.msra.mxu0 0.0
    %288 = vmatpush.msra.mxu0 0.0
    %v289 = vand.u32 %v56, 4294901760
    %290 = vmatpush.msra.mxu0 %v289
    %v291 = vand.u32 %v28, 4294901760
    %292 = vmatpush.msra.mxu0 %v291
    %v293 = vand.u32 %v43, 4294901760
    %294 = vmatmul.f32.gmra.mxu0 %v293
    %v295 = vpop.f32.mrf.mxu0
    %v296 = vadd.f32 %v261, %v295
    %v297 = vand.u32 %v46, 4294901760
    %298 = vmatmul.f32.gmra.mxu0 %v297
    %v299 = vpop.f32.mrf.mxu0
    %v300 = vadd.f32 %v265, %v299
    %v301 = vand.u32 %v49, 4294901760
    %302 = vmatmul.f32.gmra.mxu0 %v301
    %v303 = vpop.f32.mrf.mxu0
    %v304 = vadd.f32 %v269, %v303
    %v305 = vand.u32 %v52, 4294901760
    %306 = vmatmul.f32.gmra.mxu0 %v305
    %v307 = vpop.f32.mrf.mxu0
    %v308 = vadd.f32 %v273, %v307
    %309 = vdwg.mxu0
    %v310 = vld [vmem:[%s3] sm:$0xff]
    %v311 = vld [vmem:[%s3 + $0x8] sm:$0xff]
    %v312 = vld [vmem:[%s3 + $0x10] sm:$0xff]
    %v313 = vld [vmem:[%s3 + $0x18] sm:$0xff]
    %vm314 = vcmask 97280
    %v316 = vsel %vm314, %v310, 0
    %v319 = vsel %vm314, %v311, 0
    %v322 = vsel %vm314, %v312, 0
    %v325 = vsel %vm314, %v313, 0
    %vm327 = vcmask 1043456
    %v329 = vsel %vm327, %v36, 0
    %331 = vmatpush.msra.mxu0 0.0
    %332 = vmatpush.msra.mxu0 0.0
    %333 = vmatpush.msra.mxu0 0.0
    %334 = vmatpush.msra.mxu0 0.0
    %335 = vmatpush.msra.mxu0 0.0
    %336 = vmatpush.msra.mxu0 0.0
    %337 = vmatpush.msra.mxu0 0.0
    %338 = vmatpush.msra.mxu0 0.0
    %339 = vmatpush.msra.mxu0 0.0
    %340 = vmatpush.msra.mxu0 0.0
    %341 = vmatpush.msra.mxu0 0.0
    %342 = vmatpush.msra.mxu0 0.0
    %343 = vmatpush.msra.mxu0 0.0
    %344 = vmatpush.msra.mxu0 0.0
    %v345 = vand.u32 %v329, 4294901760
    %346 = vmatpush.msra.mxu0 %v345
    %v347 = vand.u32 %v35, 4294901760
    %348 = vmatpush.msra.mxu0 %v347
    %v349 = vand.u32 %v316, 4294901760
    %v350 = vsub.f32 %v316, %v349
    %v351 = vand.u32 %v350, 4294901760
    %v352 = vsub.f32 %v350, %v351
    %v353 = vand.u32 %v352, 4294901760
    %354 = vmatmul.f32.gmra.mxu0 %v353
    %v355 = vpop.f32.mrf.mxu0
    %v356 = vadd.f32 0.0, %v355
    %v357 = vand.u32 %v319, 4294901760
    %v358 = vsub.f32 %v319, %v357
    %v359 = vand.u32 %v358, 4294901760
    %v360 = vsub.f32 %v358, %v359
    %v361 = vand.u32 %v360, 4294901760
    %362 = vmatmul.f32.gmra.mxu0 %v361
    %v363 = vpop.f32.mrf.mxu0
    %v364 = vadd.f32 0.0, %v363
    %v365 = vand.u32 %v322, 4294901760
    %v366 = vsub.f32 %v322, %v365
    %v367 = vand.u32 %v366, 4294901760
    %v368 = vsub.f32 %v366, %v367
    %v369 = vand.u32 %v368, 4294901760
    %370 = vmatmul.f32.gmra.mxu0 %v369
    %v371 = vpop.f32.mrf.mxu0
    %v372 = vadd.f32 0.0, %v371
    %v373 = vand.u32 %v325, 4294901760
    %v374 = vsub.f32 %v325, %v373
    %v375 = vand.u32 %v374, 4294901760
    %v376 = vsub.f32 %v374, %v375
    %v377 = vand.u32 %v376, 4294901760
    %378 = vmatmul.f32.gmra.mxu0 %v377
    %v379 = vpop.f32.mrf.mxu0
    %v380 = vadd.f32 0.0, %v379
    %381 = vdwg.mxu0
    %382 = vmatpush.msra.mxu0 0.0
    %383 = vmatpush.msra.mxu0 0.0
    %384 = vmatpush.msra.mxu0 0.0
    %385 = vmatpush.msra.mxu0 0.0
    %386 = vmatpush.msra.mxu0 0.0
    %387 = vmatpush.msra.mxu0 0.0
    %388 = vmatpush.msra.mxu0 0.0
    %389 = vmatpush.msra.mxu0 0.0
    %390 = vmatpush.msra.mxu0 0.0
    %391 = vmatpush.msra.mxu0 0.0
    %392 = vmatpush.msra.mxu0 0.0
    %393 = vmatpush.msra.mxu0 0.0
    %394 = vmatpush.msra.mxu0 0.0
    %395 = vmatpush.msra.mxu0 0.0
    %v396 = vand.u32 %v329, 4294901760
    %v397 = vsub.f32 %v329, %v396
    %v398 = vand.u32 %v397, 4294901760
    %v399 = vsub.f32 %v397, %v398
    %v400 = vand.u32 %v399, 4294901760
    %401 = vmatpush.msra.mxu0 %v400
    %v402 = vand.u32 %v35, 4294901760
    %v403 = vsub.f32 %v35, %v402
    %v404 = vand.u32 %v403, 4294901760
    %v405 = vsub.f32 %v403, %v404
    %v406 = vand.u32 %v405, 4294901760
    %407 = vmatpush.msra.mxu0 %v406
    %v408 = vand.u32 %v316, 4294901760
    %409 = vmatmul.f32.gmra.mxu0 %v408
    %v410 = vpop.f32.mrf.mxu0
    %v411 = vadd.f32 %v356, %v410
    %v412 = vand.u32 %v319, 4294901760
    %413 = vmatmul.f32.gmra.mxu0 %v412
    %v414 = vpop.f32.mrf.mxu0
    %v415 = vadd.f32 %v364, %v414
    %v416 = vand.u32 %v322, 4294901760
    %417 = vmatmul.f32.gmra.mxu0 %v416
    %v418 = vpop.f32.mrf.mxu0
    %v419 = vadd.f32 %v372, %v418
    %v420 = vand.u32 %v325, 4294901760
    %421 = vmatmul.f32.gmra.mxu0 %v420
    %v422 = vpop.f32.mrf.mxu0
    %v423 = vadd.f32 %v380, %v422
    %424 = vdwg.mxu0
    %425 = vmatpush.msra.mxu0 0.0
    %426 = vmatpush.msra.mxu0 0.0
    %427 = vmatpush.msra.mxu0 0.0
    %428 = vmatpush.msra.mxu0 0.0
    %429 = vmatpush.msra.mxu0 0.0
    %430 = vmatpush.msra.mxu0 0.0
    %431 = vmatpush.msra.mxu0 0.0
    %432 = vmatpush.msra.mxu0 0.0
    %433 = vmatpush.msra.mxu0 0.0
    %434 = vmatpush.msra.mxu0 0.0
    %435 = vmatpush.msra.mxu0 0.0
    %436 = vmatpush.msra.mxu0 0.0
    %437 = vmatpush.msra.mxu0 0.0
    %438 = vmatpush.msra.mxu0 0.0
    %v439 = vand.u32 %v329, 4294901760
    %v440 = vsub.f32 %v329, %v439
    %441 = vmatpush.msra.mxu0 %v440
    %v442 = vand.u32 %v35, 4294901760
    %v443 = vsub.f32 %v35, %v442
    %444 = vmatpush.msra.mxu0 %v443
    %v445 = vand.u32 %v316, 4294901760
    %v446 = vsub.f32 %v316, %v445
    %447 = vmatmul.f32.gmra.mxu0 %v446
    %v448 = vpop.f32.mrf.mxu0
    %v449 = vadd.f32 %v411, %v448
    %v450 = vand.u32 %v319, 4294901760
    %v451 = vsub.f32 %v319, %v450
    %452 = vmatmul.f32.gmra.mxu0 %v451
    %v453 = vpop.f32.mrf.mxu0
    %v454 = vadd.f32 %v415, %v453
    %v455 = vand.u32 %v322, 4294901760
    %v456 = vsub.f32 %v322, %v455
    %457 = vmatmul.f32.gmra.mxu0 %v456
    %v458 = vpop.f32.mrf.mxu0
    %v459 = vadd.f32 %v419, %v458
    %v460 = vand.u32 %v325, 4294901760
    %v461 = vsub.f32 %v325, %v460
    %462 = vmatmul.f32.gmra.mxu0 %v461
    %v463 = vpop.f32.mrf.mxu0
    %v464 = vadd.f32 %v423, %v463
    %465 = vdwg.mxu0
    %466 = vmatpush.msra.mxu0 0.0
    %467 = vmatpush.msra.mxu0 0.0
    %468 = vmatpush.msra.mxu0 0.0
    %469 = vmatpush.msra.mxu0 0.0
    %470 = vmatpush.msra.mxu0 0.0
    %471 = vmatpush.msra.mxu0 0.0
    %472 = vmatpush.msra.mxu0 0.0
    %473 = vmatpush.msra.mxu0 0.0
    %474 = vmatpush.msra.mxu0 0.0
    %475 = vmatpush.msra.mxu0 0.0
    %476 = vmatpush.msra.mxu0 0.0
    %477 = vmatpush.msra.mxu0 0.0
    %478 = vmatpush.msra.mxu0 0.0
    %479 = vmatpush.msra.mxu0 0.0
    %v480 = vand.u32 %v329, 4294901760
    %481 = vmatpush.msra.mxu0 %v480
    %v482 = vand.u32 %v35, 4294901760
    %483 = vmatpush.msra.mxu0 %v482
    %v484 = vand.u32 %v316, 4294901760
    %v485 = vsub.f32 %v316, %v484
    %v486 = vand.u32 %v485, 4294901760
    %487 = vmatmul.f32.gmra.mxu0 %v486
    %v488 = vpop.f32.mrf.mxu0
    %v489 = vadd.f32 %v449, %v488
    %v490 = vand.u32 %v319, 4294901760
    %v491 = vsub.f32 %v319, %v490
    %v492 = vand.u32 %v491, 4294901760
    %493 = vmatmul.f32.gmra.mxu0 %v492
    %v494 = vpop.f32.mrf.mxu0
    %v495 = vadd.f32 %v454, %v494
    %v496 = vand.u32 %v322, 4294901760
    %v497 = vsub.f32 %v322, %v496
    %v498 = vand.u32 %v497, 4294901760
    %499 = vmatmul.f32.gmra.mxu0 %v498
    %v500 = vpop.f32.mrf.mxu0
    %v501 = vadd.f32 %v459, %v500
    %v502 = vand.u32 %v325, 4294901760
    %v503 = vsub.f32 %v325, %v502
    %v504 = vand.u32 %v503, 4294901760
    %505 = vmatmul.f32.gmra.mxu0 %v504
    %v506 = vpop.f32.mrf.mxu0
    %v507 = vadd.f32 %v464, %v506
    %508 = vdwg.mxu0
    %509 = vmatpush.msra.mxu0 0.0
    %510 = vmatpush.msra.mxu0 0.0
    %511 = vmatpush.msra.mxu0 0.0
    %512 = vmatpush.msra.mxu0 0.0
    %513 = vmatpush.msra.mxu0 0.0
    %514 = vmatpush.msra.mxu0 0.0
    %515 = vmatpush.msra.mxu0 0.0
    %516 = vmatpush.msra.mxu0 0.0
    %517 = vmatpush.msra.mxu0 0.0
    %518 = vmatpush.msra.mxu0 0.0
    %519 = vmatpush.msra.mxu0 0.0
    %520 = vmatpush.msra.mxu0 0.0
    %521 = vmatpush.msra.mxu0 0.0
    %522 = vmatpush.msra.mxu0 0.0
    %v523 = vand.u32 %v329, 4294901760
    %v524 = vsub.f32 %v329, %v523
    %v525 = vand.u32 %v524, 4294901760
    %526 = vmatpush.msra.mxu0 %v525
    %v527 = vand.u32 %v35, 4294901760
    %v528 = vsub.f32 %v35, %v527
    %v529 = vand.u32 %v528, 4294901760
    %530 = vmatpush.msra.mxu0 %v529
    %v531 = vand.u32 %v316, 4294901760
    %532 = vmatmul.f32.gmra.mxu0 %v531
    %v533 = vpop.f32.mrf.mxu0
    %v534 = vadd.f32 %v489, %v533
    %v535 = vand.u32 %v319, 4294901760
    %536 = vmatmul.f32.gmra.mxu0 %v535
    %v537 = vpop.f32.mrf.mxu0
    %v538 = vadd.f32 %v495, %v537
    %v539 = vand.u32 %v322, 4294901760
    %540 = vmatmul.f32.gmra.mxu0 %v539
    %v541 = vpop.f32.mrf.mxu0
    %v542 = vadd.f32 %v501, %v541
    %v543 = vand.u32 %v325, 4294901760
    %544 = vmatmul.f32.gmra.mxu0 %v543
    %v545 = vpop.f32.mrf.mxu0
    %v546 = vadd.f32 %v507, %v545
    %547 = vdwg.mxu0
    %548 = vmatpush.msra.mxu0 0.0
    %549 = vmatpush.msra.mxu0 0.0
    %550 = vmatpush.msra.mxu0 0.0
    %551 = vmatpush.msra.mxu0 0.0
    %552 = vmatpush.msra.mxu0 0.0
    %553 = vmatpush.msra.mxu0 0.0
    %554 = vmatpush.msra.mxu0 0.0
    %555 = vmatpush.msra.mxu0 0.0
    %556 = vmatpush.msra.mxu0 0.0
    %557 = vmatpush.msra.mxu0 0.0
    %558 = vmatpush.msra.mxu0 0.0
    %559 = vmatpush.msra.mxu0 0.0
    %560 = vmatpush.msra.mxu0 0.0
    %561 = vmatpush.msra.mxu0 0.0
    %v562 = vand.u32 %v329, 4294901760
    %563 = vmatpush.msra.mxu0 %v562
    %v564 = vand.u32 %v35, 4294901760
    %565 = vmatpush.msra.mxu0 %v564
    %v566 = vand.u32 %v316, 4294901760
    %567 = vmatmul.f32.gmra.mxu0 %v566
    %v568 = vpop.f32.mrf.mxu0
    %v569 = vadd.f32 %v534, %v568
    %v570 = vand.u32 %v319, 4294901760
    %571 = vmatmul.f32.gmra.mxu0 %v570
    %v572 = vpop.f32.mrf.mxu0
    %v573 = vadd.f32 %v538, %v572
    %v574 = vand.u32 %v322, 4294901760
    %575 = vmatmul.f32.gmra.mxu0 %v574
    %v576 = vpop.f32.mrf.mxu0
    %v577 = vadd.f32 %v542, %v576
    %v578 = vand.u32 %v325, 4294901760
    %579 = vmatmul.f32.gmra.mxu0 %v578
    %v580 = vpop.f32.mrf.mxu0
    %v581 = vadd.f32 %v546, %v580
    %582 = vdwg.mxu0
    %v583 = vmul.f32 %v296, %v569
    %v584 = vmul.f32 %v300, %v573
    %v585 = vmul.f32 %v304, %v577
    %v586 = vmul.f32 %v308, %v581
    %v587 = vadd.f32 %v583, %v584
    %v588 = vadd.f32 %v587, %v585
    %v589 = vadd.f32 %v588, %v586
    %v590 = vrot.slane %v589, 4
    %v591 = vadd.f32 %v589, %v590
    %v592 = vrot.slane %v591, 2
    %v593 = vadd.f32 %v591, %v592
    %v594 = vrot.slane %v593, 1
    %v595 = vadd.f32 %v593, %v594
    %596 = vst [vmem:[#allocation2] sm:$0x1] %v595
    // Predicated region
    $region18: #{tpu_custom_call.1} parent=1 // pred_check
      _
    $region19: #{tpu_custom_call.1} parent=1 // pred_check_branch
      %598 = sbr.rel (0) target = $region21
    $region20: #{tpu_custom_call.1} parent=1 // pred_region
      %600 = vsyncadd [#allocation3], 0
      %s602 = sshll.u32 [#allocation2], 4
      %s603 = int_to_ptr.vmem [resolvable:$true] %s602
      %s604 = sshll.u32 %s4, 4
      %s605 = int_to_ptr.hbm [resolvable:$true] %s604
      %607 = dma.vmem_to_hbm [thread:$0]  %s603, 16, %s605, [#allocation3]
    $region21: #{tpu_custom_call.1} parent=1 // pred_fallthru
      _
    // Predicated region
    $region22: #{tpu_custom_call.1} parent=1 // pred_check
      _
    $region23: #{tpu_custom_call.1} parent=1 // pred_check_branch
      %609 = sbr.rel (0) target = $region25
    $region24: #{tpu_custom_call.1} parent=1 // pred_region
      %611 = dma.done [#allocation3], 16
    $region25: #{tpu_custom_call.1} parent=1 // pred_fallthru
      _
    %612 = vsyncpa [#allocation3], 1

</llo_original>
